<compile_context>
chip_gen: v6e
topology: v6e:2x2x1
jax: 0.10.0
libtpu: 0.0.40
codegen_flags: <defaults>
</compile_context>

<pallas_src>
import functools

import jax
import jax.numpy as jnp
from jax.experimental import pallas as pl
from jax.experimental.pallas import tpu as pltpu

LANES = 128
# (1024, 128) f32 tile = 512 KiB; 2 inputs x 2 pipeline buffers + accumulator
# = ~2.5 MiB VMEM -> comfortable on v5e / v6e / v7x default scoped limits.
MAX_TILE_ROWS = 1024


def _round_up(v, m):
    return ((v + m - 1) // m) * m


def _focal_loss_kernel(x_ref, t_ref, o_ref, acc_ref, *, gamma, n_valid,
                       tile_rows, needs_mask):
    step = pl.program_id(0)

    # Zero the running (tile-shaped) accumulator on the first grid step.
    @pl.when(step == 0)
    def _():
        acc_ref[...] = jnp.zeros_like(acc_ref)

    # Load in native dtype, cast to f32 inside the kernel (no wrapper pass).
    x = x_ref[...].astype(jnp.float32)
    t = t_ref[...].astype(jnp.float32)

    # Stable softplus: softplus(v) = max(v, 0) + log(1 + exp(-|v|)).
    # 1 exp + 1 log (EUP) per call, vs 2 exp + 1 log in the naive form.
    def _softplus(v):
        return jnp.maximum(v, 0.0) + jnp.log(1.0 + jnp.exp(-jnp.abs(v)))

    # loss = x - x*t + max(-x,0) + log(exp(-max(-x,0)) + exp(-x-max(-x,0)))
    #      = x - x*t + softplus(-x)        (identical, soft-label safe)
    loss = x - x * t + _softplus(-x)
    # invprobs = logsigmoid(-x*(2t-1)) = -softplus(x*(2t-1))
    invprobs = -_softplus(x * (t * 2.0 - 1.0))
    loss = jnp.exp(invprobs * gamma) * loss

    if needs_mask:
        # Validity recomputed from iota (no mask stream from HBM); only the
        # tail of the last tile can be invalid, the compare is cheap VPU
        # filler hidden under the memory/EUP bottleneck.
        base = step * (tile_rows * LANES)
        rows = jax.lax.broadcasted_iota(jnp.int32, (tile_rows, LANES), 0)
        cols = jax.lax.broadcasted_iota(jnp.int32, (tile_rows, LANES), 1)
        valid = (base + rows * LANES + cols) < n_valid
        loss = jnp.where(valid, loss, 0.0)

    # Hot loop stays pure elementwise (VPU) — no per-step cross-lane reduce.
    acc_ref[...] += loss

    # Single cross-lane reduction + mean only on the final grid step.
    @pl.when(step == pl.num_programs(0) - 1)
    def _():
        o_ref[...] = jnp.sum(acc_ref[...], keepdims=True) / jnp.float32(n_valid)


def focal_loss(inputs, target, gamma=2.0):
    assert inputs.shape == target.shape
    n_valid = int(inputs.size)

    x = inputs.reshape(-1)
    t = target.reshape(-1)

    rows_needed = (n_valid + LANES - 1) // LANES
    tile_rows = min(MAX_TILE_ROWS, _round_up(rows_needed, 8))
    rows_padded = _round_up(rows_needed, tile_rows)
    padded_len = rows_padded * LANES
    pad = padded_len - n_valid
    if pad:
        # Only the small tail is padded (zeros); validity handled in-kernel.
        x = jnp.pad(x, (0, pad))
        t = jnp.pad(t, (0, pad))

    x2 = x.reshape(rows_padded, LANES)
    t2 = t.reshape(rows_padded, LANES)
    grid = (rows_padded // tile_rows,)

    kernel = functools.partial(
        _focal_loss_kernel,
        gamma=float(gamma),
        n_valid=n_valid,
        tile_rows=tile_rows,
        needs_mask=(pad > 0),
    )

    tile_spec = pl.BlockSpec((tile_rows, LANES), lambda i: (i, 0))
    out = pl.pallas_call(
        kernel,
        out_shape=jax.ShapeDtypeStruct((1, 1), jnp.float32),
        grid_spec=pltpu.PrefetchScalarGridSpec(
            num_scalar_prefetch=0,
            grid=grid,
            in_specs=[tile_spec, tile_spec],
            out_specs=pl.BlockSpec((1, 1), lambda i: (0, 0)),
            scratch_shapes=[pltpu.VMEM((tile_rows, LANES), jnp.float32)],
        ),
        compiler_params=pltpu.CompilerParams(
            dimension_semantics=("arbitrary",),
        ),
    )(x2, t2)
    # TODO(synk): on v7x, split the reduction over the 2 TensorCores with a
    # leading "parallel" grid axis and per-core partial sums (~2x there).
    return out[0, 0]


def _focal_loss_ref(inputs, target, gamma=2.0):
    x = inputs.astype(jnp.float32)
    t = target.astype(jnp.float32)
    max_val = jnp.maximum(-x, 0.0)
    loss = x - x * t + max_val + jnp.log(
        jnp.exp(-max_val) + jnp.exp(-x - max_val)
    )
    invprobs = jax.nn.log_sigmoid(-x * (t * 2.0 - 1.0))
    loss = jnp.exp(invprobs * gamma) * loss
    return jnp.mean(loss)


if __name__ == "__main__":
    key = jax.random.PRNGKey(0)
    k_x, k_t, k_x2, k_t2 = jax.random.split(key, 4)

    # Small NCHW-shaped logits and binary targets (tile-aligned case).
    x = jax.random.normal(k_x, (2, 4, 16, 16), dtype=jnp.float32)
    t = (jax.random.uniform(k_t, (2, 4, 16, 16)) > 0.5).astype(jnp.float32)

    out = focal_loss(x, t, gamma=2.0)
    out = jax.block_until_ready(out)
    ref = _focal_loss_ref(x, t, gamma=2.0)
    assert jnp.allclose(out, ref, rtol=1e-5, atol=1e-5), (out, ref)

    # Non-aligned size to exercise the in-kernel validity mask path.
    xb = jax.random.normal(k_x2, (3, 5, 7, 11), dtype=jnp.float32)
    tb = (jax.random.uniform(k_t2, (3, 5, 7, 11)) > 0.5).astype(jnp.float32)

    out_b = focal_loss(xb, tb, gamma=2.0)
    out_b = jax.block_until_ready(out_b)
    ref_b = _focal_loss_ref(xb, tb, gamma=2.0)
    assert jnp.allclose(out_b, ref_b, rtol=1e-5, atol=1e-5), (out_b, ref_b)

    print("KERNEL_OK")
</pallas_src>

<mosaic_0001>
module attributes {stable_mosaic.version = 11 : i64} {
  func.func @_focal_loss_kernel(%arg0: i32, %arg1: memref<16x128xf32, #tpu.memory_space<vmem>>, %arg2: memref<16x128xf32, #tpu.memory_space<vmem>>, %arg3: memref<1x1xf32, #tpu.memory_space<vmem>>, %arg4: memref<16x128xf32, #tpu.memory_space<vmem>>) attributes {dimension_semantics = [#tpu.dimension_semantics<arbitrary>], iteration_bounds = array<i64: 1>, scalar_prefetch = 0 : i64, scratch_operands = 1 : i64, tpu.core_type = #tpu.core_type<tc>, window_params = [{transform_indices = @transform_0, window_bounds = array<i64: 16, 128>}, {transform_indices = @transform_1, window_bounds = array<i64: 16, 128>}, {pipeline_mode = #tpu.pipeline_mode<synchronous>, transform_indices = @transform_2, window_bounds = array<i64: 1, 1>}]} {
    %c0_i32 = arith.constant 0 : i32
    %0 = arith.cmpi eq, %arg0, %c0_i32 : i32
    %1 = arith.extui %0 : i1 to i32
    %c0_i32_0 = arith.constant 0 : i32
    %2 = arith.cmpi ne, %1, %c0_i32_0 : i32
    scf.if %2 {
      %cst_20 = arith.constant 0.000000e+00 : f32
      %47 = vector.broadcast %cst_20 : f32 to vector<16x128xf32>
      %c0_21 = arith.constant 0 : index
      %c0_22 = arith.constant 0 : index
      %48 = vector.load %arg4[%c0_21, %c0_22] : memref<16x128xf32, #tpu.memory_space<vmem>>, vector<16x128xf32>
      tpu.vector_store %arg4[%c0_21, %c0_22], %47 {strides = array<i32>} : memref<16x128xf32, #tpu.memory_space<vmem>>, vector<16x128xf32>,
    } else {
    }
    %c0 = arith.constant 0 : index
    %c0_1 = arith.constant 0 : index
    %3 = vector.load %arg1[%c0, %c0_1] : memref<16x128xf32, #tpu.memory_space<vmem>>, vector<16x128xf32>
    %c0_2 = arith.constant 0 : index
    %c0_3 = arith.constant 0 : index
    %4 = vector.load %arg2[%c0_2, %c0_3] : memref<16x128xf32, #tpu.memory_space<vmem>>, vector<16x128xf32>
    %5 = arith.mulf %3, %4 : vector<16x128xf32>
    %6 = arith.subf %3, %5 : vector<16x128xf32>
    %cst = arith.constant 0.000000e+00 : f32
    %7 = vector.broadcast %cst : f32 to vector<16x128xf32>
    %8 = arith.subf %7, %3 : vector<16x128xf32>
    %cst_4 = arith.constant 0.000000e+00 : f32
    %9 = vector.broadcast %cst_4 : f32 to vector<16x128xf32>
    %10 = arith.maximumf %8, %9 : vector<16x128xf32>
    %11 = math.absf %8 : vector<16x128xf32>
    %cst_5 = arith.constant 0.000000e+00 : f32
    %12 = vector.broadcast %cst_5 : f32 to vector<16x128xf32>
    %13 = arith.subf %12, %11 : vector<16x128xf32>
    %14 = math.exp %13 : vector<16x128xf32>
    %cst_6 = arith.constant 1.000000e+00 : f32
    %15 = vector.broadcast %cst_6 : f32 to vector<16x128xf32>
    %16 = arith.addf %15, %14 : vector<16x128xf32>
    %17 = math.log %16 : vector<16x128xf32>
    %18 = arith.addf %10, %17 : vector<16x128xf32>
    %19 = arith.addf %6, %18 : vector<16x128xf32>
    %cst_7 = arith.constant 2.000000e+00 : f32
    %20 = vector.broadcast %cst_7 : f32 to vector<16x128xf32>
    %21 = arith.mulf %4, %20 : vector<16x128xf32>
    %cst_8 = arith.constant 1.000000e+00 : f32
    %22 = vector.broadcast %cst_8 : f32 to vector<16x128xf32>
    %23 = arith.subf %21, %22 : vector<16x128xf32>
    %24 = arith.mulf %3, %23 : vector<16x128xf32>
    %cst_9 = arith.constant 0.000000e+00 : f32
    %25 = vector.broadcast %cst_9 : f32 to vector<16x128xf32>
    %26 = arith.maximumf %24, %25 : vector<16x128xf32>
    %27 = math.absf %24 : vector<16x128xf32>
    %cst_10 = arith.constant 0.000000e+00 : f32
    %28 = vector.broadcast %cst_10 : f32 to vector<16x128xf32>
    %29 = arith.subf %28, %27 : vector<16x128xf32>
    %30 = math.exp %29 : vector<16x128xf32>
    %cst_11 = arith.constant 1.000000e+00 : f32
    %31 = vector.broadcast %cst_11 : f32 to vector<16x128xf32>
    %32 = arith.addf %31, %30 : vector<16x128xf32>
    %33 = math.log %32 : vector<16x128xf32>
    %34 = arith.addf %26, %33 : vector<16x128xf32>
    %cst_12 = arith.constant 0.000000e+00 : f32
    %35 = vector.broadcast %cst_12 : f32 to vector<16x128xf32>
    %36 = arith.subf %35, %34 : vector<16x128xf32>
    %cst_13 = arith.constant 2.000000e+00 : f32
    %37 = vector.broadcast %cst_13 : f32 to vector<16x128xf32>
    %38 = arith.mulf %36, %37 : vector<16x128xf32>
    %39 = math.exp %38 : vector<16x128xf32>
    %40 = arith.mulf %39, %19 : vector<16x128xf32>
    %c0_14 = arith.constant 0 : index
    %c0_15 = arith.constant 0 : index
    %41 = vector.load %arg4[%c0_14, %c0_15] : memref<16x128xf32, #tpu.memory_space<vmem>>, vector<16x128xf32>
    %42 = arith.addf %41, %40 : vector<16x128xf32>
    %c0_16 = arith.constant 0 : index
    %c0_17 = arith.constant 0 : index
    %43 = vector.load %arg4[%c0_16, %c0_17] : memref<16x128xf32, #tpu.memory_space<vmem>>, vector<16x128xf32>
    tpu.vector_store %arg4[%c0_16, %c0_17], %42 {strides = array<i32>} : memref<16x128xf32, #tpu.memory_space<vmem>>, vector<16x128xf32>,
    %c0_i32_18 = arith.constant 0 : i32
    %44 = arith.cmpi eq, %arg0, %c0_i32_18 : i32
    %45 = arith.extui %44 : i1 to i32
    %c0_i32_19 = arith.constant 0 : i32
    %46 = arith.cmpi ne, %45, %c0_i32_19 : i32
    scf.if %46 {
      %c0_20 = arith.constant 0 : index
      %c0_21 = arith.constant 0 : index
      %47 = vector.load %arg4[%c0_20, %c0_21] : memref<16x128xf32, #tpu.memory_space<vmem>>, vector<16x128xf32>
      %48 = vector.shape_cast %47 : vector<16x128xf32> to vector<1x16x128xf32>
      %cst_22 = arith.constant dense<0.000000e+00> : vector<1xf32>
      %49 = vector.multi_reduction <add>, %48, %cst_22 [1, 2] : vector<1x16x128xf32> to vector<1xf32>
      %50 = vector.shape_cast %49 : vector<1xf32> to vector<1x1x1xf32>
      %51 = vector.extract %50[0, 0, 0] : f32 from vector<1x1x1xf32>
      %52 = vector.broadcast %51 : f32 to vector<1x1xf32>
      %cst_23 = arith.constant 2.048000e+03 : f32
      %53 = vector.broadcast %cst_23 : f32 to vector<1x1xf32>
      %54 = arith.divf %52, %53 : vector<1x1xf32>
      %c0_24 = arith.constant 0 : index
      %c0_25 = arith.constant 0 : index
      %55 = vector.load %arg3[%c0_24, %c0_25] : memref<1x1xf32, #tpu.memory_space<vmem>>, vector<1x1xf32>
      tpu.vector_store %arg3[%c0_24, %c0_25], %54 {strides = array<i32>} : memref<1x1xf32, #tpu.memory_space<vmem>>, vector<1x1xf32>,
    } else {
    }
    return
  }
  func.func @transform_0(%arg0: i32) -> (i32, i32) {
    %c0_i32 = arith.constant 0 : i32
    %c0_i32_0 = arith.constant 0 : i32
    return %arg0, %c0_i32 : i32, i32
  }
  func.func @transform_1(%arg0: i32) -> (i32, i32) {
    %c0_i32 = arith.constant 0 : i32
    %c0_i32_0 = arith.constant 0 : i32
    return %arg0, %c0_i32 : i32, i32
  }
  func.func @transform_2(%arg0: i32) -> (i32, i32) {
    %c0_i32 = arith.constant 0 : i32
    %c0_i32_0 = arith.constant 0 : i32
    %c0_i32_1 = arith.constant 0 : i32
    return %c0_i32, %c0_i32_0 : i32, i32
  }
}

</mosaic_0001>

<llo_original>
// kernel: tpu_custom_call.1
$region0: #{tpu_custom_call.1}
  #allocation0 [shape = 'u32[]', space=smem, size = 0x4, offset = 0x4, fixed_abs, tag = 'smem constant byte address 0x4 - core index']
  #allocation1 [shape = 'u32[144,128]{1,0:T(1,128)}', space=vmem, size = 0x12000, scoped, tag = 'internal scratch']
  #allocation2 [shape = 'f32[16,128]{1,0:T(8,128)}', space=vmem, size = 0x2000, scoped, tag = 'scratch operand']
  %s0 = inlined_call_operand.hbm [shape: f32[16,128], index: 0, kind: input, shape index: {}]
  %s1 = inlined_call_operand.hbm [shape: f32[16,128], index: 1, kind: input, shape index: {}]
  %s2 = inlined_call_operand.hbm [shape: f32[1,1], index: 2, kind: output, shape index: {}]
  %s3 = sld [smem:[#allocation0]]
  $region34: #{tpu_custom_call.1} parent=0
    _
  %s5 = ssub.s32 1, %s3
  %s6 = scalar_select 0, %s5, %s3
  $region1: #{tpu_custom_call.1} parent=0
    #allocation3 [shape = 'u8[8192]{0}', space=vmem, size = 0x2000, scoped, tag = 'input window, operand 0, single buffered']
    #allocation4 [shape = 's32[1]{0}', space=sflag, size = 0x4, scoped, tag = 'scoped memory for tpu_custom_call.1']
    #allocation5 [shape = 's32[1]{0}', space=sflag, size = 0x4, scoped, tag = 'scoped memory for tpu_custom_call.1']
    #allocation6 [shape = 'u8[8192]{0}', space=vmem, size = 0x2000, scoped, tag = 'input window, operand 1, single buffered']
    #allocation7 [shape = 's32[1]{0}', space=sflag, size = 0x4, scoped, tag = 'scoped memory for tpu_custom_call.1']
    #allocation8 [shape = 'u8[512]{0}', space=vmem, size = 0x400, scoped, tag = 'output window, operand 0, single buffered']
    %7 = vsyncpa [#allocation4], 0
    %8 = vsyncpa [#allocation7], 0
    %9 = vsyncpa [#allocation5], 0
    // Predicated region
    $region2: #{tpu_custom_call.1} parent=1 // pred_check
      _
    $region3: #{tpu_custom_call.1} parent=1 // pred_check_branch
      %11 = sbr.rel (0) target = $region5
    $region4: #{tpu_custom_call.1} parent=1 // pred_region
      %s13 = ssub.s32 256, 256
      %14 = vsyncadd [#allocation4], %s13
      %s15 = sshll.u32 [#allocation3], 4
      %s16 = int_to_ptr.vmem [resolvable:$true] %s15
      %21 = dma.hbm_to_vmem [thread:$0]  %s0, 256, %s16, [#allocation4], 128, 128, 8
    $region5: #{tpu_custom_call.1} parent=1 // pred_fallthru
      _
    // Predicated region
    $region6: #{tpu_custom_call.1} parent=1 // pred_check
      _
    $region7: #{tpu_custom_call.1} parent=1 // pred_check_branch
      %23 = sbr.rel (0) target = $region9
    $region8: #{tpu_custom_call.1} parent=1 // pred_region
      %s25 = ssub.s32 256, 256
      %26 = vsyncadd [#allocation7], %s25
      %s27 = sshll.u32 [#allocation6], 4
      %s28 = int_to_ptr.vmem [resolvable:$true] %s27
      %33 = dma.hbm_to_vmem [thread:$0]  %s1, 256, %s28, [#allocation7], 128, 128, 8
    $region9: #{tpu_custom_call.1} parent=1 // pred_fallthru
      _
    // Predicated region
    $region10: #{tpu_custom_call.1} parent=1 // pred_check
      _
    $region11: #{tpu_custom_call.1} parent=1 // pred_check_branch
      %35 = sbr.rel (0) target = $region13
    $region12: #{tpu_custom_call.1} parent=1 // pred_region
      %36 = dma.done [#allocation4], 256
    $region13: #{tpu_custom_call.1} parent=1 // pred_fallthru
      _
    // Predicated region
    $region14: #{tpu_custom_call.1} parent=1 // pred_check
      _
    $region15: #{tpu_custom_call.1} parent=1 // pred_check_branch
      %38 = sbr.rel (0) target = $region17
    $region16: #{tpu_custom_call.1} parent=1 // pred_region
      %39 = dma.done [#allocation7], 256
    $region17: #{tpu_custom_call.1} parent=1 // pred_fallthru
      _
    %p40 = scmp.eq.s32.totalorder 0, 0
    // Predicated region
    $region18: #{tpu_custom_call.1} parent=1 // pred_check
      %p41 = pneg %p40
    $region19: #{tpu_custom_call.1} parent=1 // pred_check_branch
      %43 = sbr.rel (%p41) target = $region21
    $region20: #{tpu_custom_call.1} parent=1 // pred_region
      %44 = vst [vmem:[#allocation2] sm:$0xff] 0.0
      %45 = vst [vmem:[#allocation2 + $0x8] sm:$0xff] 0.0
    $region21: #{tpu_custom_call.1} parent=1 // pred_fallthru
      _
    %v46 = vld [vmem:[#allocation3] sm:$0xff]
    %v47 = vld [vmem:[#allocation3 + $0x8] sm:$0xff]
    %v48 = vld [vmem:[#allocation6] sm:$0xff]
    %v49 = vld [vmem:[#allocation6 + $0x8] sm:$0xff]
    %v50 = vmul.f32 %v46, %v48
    %v51 = vmul.f32 %v47, %v49
    %v52 = vsub.f32 %v46, %v50
    %v53 = vsub.f32 %v47, %v51
    %v54 = vsub.f32 0.0, %v46
    %v55 = vsub.f32 0.0, %v47
    %v56 = vmax.f32 %v54, 0.0
    %v57 = vmax.f32 %v55, 0.0
    %v58 = vand.u32 2147483647, %v54
    %v59 = vand.u32 2147483647, %v55
    %v60 = vsub.f32 0.0, %v58
    %v61 = vsub.f32 0.0, %v59
    %v62 = vmul.f32 %v60, 1.442695
    %v63 = vpow.pop %v62
    %v64 = vmul.f32 %v61, 1.442695
    %v65 = vpow.pop %v64
    %v66 = vadd.f32 %v63, 1.0
    %v67 = vadd.f32 %v65, 1.0
    %v68 = vlog2.pop %v66
    %v69 = vmul.f32 %v68, 0.6931472
    %v70 = vlog2.pop %v67
    %v71 = vmul.f32 %v70, 0.6931472
    %v72 = vadd.f32 %v56, %v69
    %v73 = vadd.f32 %v57, %v71
    %v74 = vadd.f32 %v52, %v72
    %v75 = vadd.f32 %v53, %v73
    %v76 = vmul.f32 %v48, 2.0
    %v77 = vmul.f32 %v49, 2.0
    %v78 = vsub.f32 %v76, 1.0
    %v79 = vsub.f32 %v77, 1.0
    %v80 = vmul.f32 %v46, %v78
    %v81 = vmul.f32 %v47, %v79
    %v82 = vmax.f32 %v80, 0.0
    %v83 = vmax.f32 %v81, 0.0
    %v84 = vand.u32 2147483647, %v80
    %v85 = vand.u32 2147483647, %v81
    %v86 = vsub.f32 0.0, %v84
    %v87 = vsub.f32 0.0, %v85
    %v88 = vmul.f32 %v86, 1.442695
    %v89 = vpow.pop %v88
    %v90 = vmul.f32 %v87, 1.442695
    %v91 = vpow.pop %v90
    %v92 = vadd.f32 %v89, 1.0
    %v93 = vadd.f32 %v91, 1.0
    %v94 = vlog2.pop %v92
    %v95 = vmul.f32 %v94, 0.6931472
    %v96 = vlog2.pop %v93
    %v97 = vmul.f32 %v96, 0.6931472
    %v98 = vadd.f32 %v82, %v95
    %v99 = vadd.f32 %v83, %v97
    %v100 = vsub.f32 0.0, %v98
    %v101 = vsub.f32 0.0, %v99
    %v102 = vmul.f32 %v100, 2.0
    %v103 = vmul.f32 %v101, 2.0
    %v104 = vmul.f32 %v102, 1.442695
    %v105 = vpow.pop %v104
    %v106 = vmul.f32 %v103, 1.442695
    %v107 = vpow.pop %v106
    %v108 = vmul.f32 %v105, %v74
    %v109 = vmul.f32 %v107, %v75
    %v110 = vld [vmem:[#allocation2] sm:$0xff]
    %v111 = vld [vmem:[#allocation2 + $0x8] sm:$0xff]
    %v112 = vadd.f32 %v110, %v108
    %v113 = vadd.f32 %v111, %v109
    %114 = vst [vmem:[#allocation2] sm:$0xff] %v112
    %115 = vst [vmem:[#allocation2 + $0x8] sm:$0xff] %v113
    // Predicated region
    $region22: #{tpu_custom_call.1} parent=1 // pred_check
      %p116 = pneg %p40
    $region23: #{tpu_custom_call.1} parent=1 // pred_check_branch
      %118 = sbr.rel (%p116) target = $region25
    $region24: #{tpu_custom_call.1} parent=1 // pred_region
      %v119 = vld [vmem:[#allocation2] sm:$0xff]
      %v120 = vld [vmem:[#allocation2 + $0x8] sm:$0xff]
      %v121 = vadd.f32 %v119, %v120
      %122 = vadd.xlane.f32.xlu0 %v121
      %v123 = vpop.xlane.xlu0 %122
      %v124 = vrot.slane %v123, 4
      %v125 = vadd.f32 %v123, %v124
      %v126 = vrot.slane %v125, 2
      %v127 = vadd.f32 %v125, %v126
      %v128 = vrot.slane %v127, 1
      %v129 = vadd.f32 %v127, %v128
      %s130 = vtos %v129
      %v131 = vstv %s130
      %v132 = vrcp.pop 2048.0
      %v133 = vmul.f32 %v131, %v132
      %vm134 = vcmask 0
      %135 = vst.msk [vmem:[#allocation8] sm:$0x1] %vm134, %v133
    $region25: #{tpu_custom_call.1} parent=1 // pred_fallthru
      _
    // Predicated region
    $region26: #{tpu_custom_call.1} parent=1 // pred_check
      _
    $region27: #{tpu_custom_call.1} parent=1 // pred_check_branch
      %137 = sbr.rel (0) target = $region29
    $region28: #{tpu_custom_call.1} parent=1 // pred_region
      %s139 = ssub.s32 16, 16
      %140 = vsyncadd [#allocation5], %s139
      %s142 = sshll.u32 [#allocation8], 4
      %s143 = int_to_ptr.vmem [resolvable:$true] %s142
      %145 = dma.vmem_to_hbm [thread:$0]  %s143, 16, %s2, [#allocation5]
    $region29: #{tpu_custom_call.1} parent=1 // pred_fallthru
      _
    // Predicated region
    $region30: #{tpu_custom_call.1} parent=1 // pred_check
      _
    $region31: #{tpu_custom_call.1} parent=1 // pred_check_branch
      %147 = sbr.rel (0) target = $region33
    $region32: #{tpu_custom_call.1} parent=1 // pred_region
      %148 = dma.done [#allocation5], 16
    $region33: #{tpu_custom_call.1} parent=1 // pred_fallthru
      _
    %149 = vsyncpa [#allocation4], 1
    %150 = vsyncpa [#allocation7], 1
    %151 = vsyncpa [#allocation5], 1

</llo_original>
